<compile_context>
chip_gen: v7x
topology: tpu7x:2x2x1
jax: 0.10.0
libtpu: 0.0.40
codegen_flags: <defaults>
</compile_context>

<pallas_src>
import functools

import jax
import jax.numpy as jnp
from jax.experimental import pallas as pl
from jax.experimental.pallas import tpu as pltpu


def _round_up(n, m):
    return ((n + m - 1) // m) * m


def _head_kernel(x_ref, w_ref, b_ref, labels_ref, logits_ref, loss_ref, *,
                 num_labels, batch):
    # x_ref:      [TB, D]   CLS rows (native dtype: f32 or bf16)
    # w_ref:      [D, LP]   fused (pre_classifier @ classifier) weight, lane-padded
    # b_ref:      [1, LP]   fused bias (f32), pad lanes are 0
    # labels_ref: [TB, 1]   int32 labels (ragged-tile pad rows hold garbage -> masked)
    # logits_ref: [TB, LP]  logits (pad lanes sliced off in wrapper; OOB rows masked
    #                       by Pallas on writeback)
    # loss_ref:   [TB, 1]   f32 per-example CE loss (0 for pad rows)
    x = x_ref[...]
    w = w_ref[...]

    # Single fused linear; f32 accumulation on the MXU. Dropout is identity in eval.
    logits = jnp.dot(x, w, preferred_element_type=jnp.float32) + b_ref[...]
    logits_ref[...] = logits.astype(logits_ref.dtype)

    tb, lp = logits.shape
    cols = jax.lax.broadcasted_iota(jnp.int32, (tb, lp), 1)

    # Stable log-sum-exp over the *real* label columns only (mask the lane padding).
    # Kept in f32 (the -1e30 mask is only safe in f32).
    masked = jnp.where(cols < num_labels, logits, -1e30)
    m = jnp.max(masked, axis=-1, keepdims=True)
    lse = m + jnp.log(jnp.sum(jnp.exp(masked - m), axis=-1, keepdims=True))

    onehot = (cols == labels_ref[...]).astype(jnp.float32)
    correct = jnp.sum(masked * onehot, axis=-1, keepdims=True)

    # Ragged last tile: select (not multiply) so garbage rows can never produce NaN.
    rows = pl.program_id(0) * tb + jax.lax.broadcasted_iota(jnp.int32, (tb, 1), 0)
    loss_ref[...] = jnp.where(rows < batch, lse - correct, 0.0)


def fold_head_params(w1, b1, w2, b2, *, compute_dtype=jnp.float32):
    """Fold pre_classifier (w1,b1) and classifier (w2,b2) into one (W, b).

    Call once per weight update (hoisted out of the per-forward path).
    Returns (w_fused_padded [D, LP] compute_dtype, b_fused_padded [1, LP] f32).
    """
    L = w2.shape[1]
    LP = _round_up(max(L, 128), 128)
    w_fused = jnp.dot(w1.astype(jnp.float32), w2.astype(jnp.float32))          # [D, L]
    b_fused = jnp.dot(b1.astype(jnp.float32), w2.astype(jnp.float32)) + b2.astype(jnp.float32)
    w = jnp.pad(w_fused, ((0, 0), (0, LP - L))).astype(compute_dtype)          # [D, LP]
    b = jnp.pad(b_fused, (0, LP - L)).astype(jnp.float32).reshape(1, LP)       # [1, LP]
    return w, b


def modified_model5_head(hidden5, w_folded, b_folded, labels, num_labels, *,
                         logits_dtype=jnp.float32):
    """hidden5: [B, S, D]; w_folded:[D, LP]; b_folded:[1, LP]; labels:[B] int.

    Returns (logits [B, num_labels] f32, loss scalar f32) matching
    ModifiedModel5.forward with labels provided.
    """
    B, S, D = hidden5.shape
    LP = w_folded.shape[1]
    L = num_labels

    itemsize = jnp.dtype(hidden5.dtype).itemsize
    sub = max(8, 32 // max(itemsize, 1))          # 8 rows for f32, 16 for bf16

    # Large batch tile (step-overhead bound kernel), but keep >= 2 grid steps when the
    # batch allows so v7x's two TensorCores both get work via the "parallel" axis.
    TB = min(1024, max(sub, _round_up(pl.cdiv(B, 2), sub)))
    grid = (pl.cdiv(B, TB),)

    if D % 128 == 0:
        # Row-major reshape is free; the BlockSpec pulls only the CLS columns of each
        # row straight from HBM -- the full [B, S, D] tensor is never copied.
        x_in = hidden5.reshape(B, S * D)
    else:
        # Small-D fallback: the last block dim must be 128-divisible or equal the full
        # array dim, so materialize the [B, D] CLS slice.
        x_in = hidden5[:, 0, :]

    lab = labels.astype(jnp.int32).reshape(B, 1)

    wsize = jnp.dtype(w_folded.dtype).itemsize
    cost = pl.CostEstimate(
        flops=2 * B * D * LP,
        transcendentals=B * (LP + 1),
        bytes_accessed=(B * D * itemsize + D * LP * wsize + LP * 4
                        + B * 4 + B * LP * jnp.dtype(logits_dtype).itemsize + B * 4),
    )

    kernel = functools.partial(_head_kernel, num_labels=L, batch=B)
    logits_pad, per_example_loss = pl.pallas_call(
        kernel,
        grid=grid,
        in_specs=[
            pl.BlockSpec((TB, D), lambda i: (i, 0)),   # CLS rows (batch-tiled)
            pl.BlockSpec((D, LP), lambda i: (0, 0)),   # fused weight (resident)
            pl.BlockSpec((1, LP), lambda i: (0, 0)),   # fused bias (resident)
            pl.BlockSpec((TB, 1), lambda i: (i, 0)),   # labels (batch-tiled)
        ],
        out_specs=(
            pl.BlockSpec((TB, LP), lambda i: (i, 0)),  # lane-dense logits
            pl.BlockSpec((TB, 1), lambda i: (i, 0)),   # per-example losses
        ),
        out_shape=(
            jax.ShapeDtypeStruct((B, LP), logits_dtype),
            jax.ShapeDtypeStruct((B, 1), jnp.float32),
        ),
        compiler_params=pltpu.CompilerParams(
            dimension_semantics=("parallel",),
            vmem_limit_bytes=32 * 1024 * 1024,
        ),
        cost_estimate=cost,
    )(x_in, w_folded, b_folded, lab)

    logits = logits_pad[:, :L].astype(jnp.float32)
    # Mean cross-entropy over the real batch (ragged-tile rows were zero-selected).
    loss = jnp.sum(per_example_loss) / B
    return logits, loss


def _reference(hidden5, w1, b1, w2, b2, labels):
    x = hidden5[:, 0, :].astype(jnp.float32)
    h = x @ w1 + b1
    logits = h @ w2 + b2
    lse = jax.scipy.special.logsumexp(logits, axis=-1)
    correct = jnp.take_along_axis(logits, labels[:, None], axis=-1)[:, 0]
    loss = jnp.mean(lse - correct)
    return logits, loss


if __name__ == "__main__":
    # Small shapes consistent with the module: batch=2, seq=8, hidden=32, num_labels=2.
    B, S, D, L = 2, 8, 32, 2
    key = jax.random.PRNGKey(0)
    k_h, k_w1, k_b1, k_w2, k_b2, k_lab = jax.random.split(key, 6)

    hidden5 = jax.random.normal(k_h, (B, S, D), dtype=jnp.float32)
    # pre_classifier: Linear(D, D); classifier: Linear(D, L)
    w1 = jax.random.normal(k_w1, (D, D), dtype=jnp.float32) * 0.05
    b1 = jax.random.normal(k_b1, (D,), dtype=jnp.float32) * 0.05
    w2 = jax.random.normal(k_w2, (D, L), dtype=jnp.float32) * 0.05
    b2 = jax.random.normal(k_b2, (L,), dtype=jnp.float32) * 0.05
    labels = jax.random.randint(k_lab, (B,), 0, L, dtype=jnp.int32)

    ref_logits, ref_loss = _reference(hidden5, w1, b1, w2, b2, labels)

    # f32 path (tight tolerance). Weight fold hoisted out of the forward call.
    w_f32, b_f32 = fold_head_params(w1, b1, w2, b2, compute_dtype=jnp.float32)
    logits, loss = modified_model5_head(hidden5, w_f32, b_f32, labels, L)
    logits = jax.block_until_ready(logits)
    loss = jax.block_until_ready(loss)
    assert jnp.allclose(logits, ref_logits, atol=1e-4, rtol=1e-4)
    assert jnp.allclose(loss, ref_loss, atol=1e-4, rtol=1e-4)

    # bf16-into-MXU path (native on v6e/v7x): same kernel, looser tolerance.
    w_bf, b_bf = fold_head_params(w1, b1, w2, b2, compute_dtype=jnp.bfloat16)
    logits_bf, loss_bf = modified_model5_head(
        hidden5.astype(jnp.bfloat16), w_bf, b_bf, labels, L)
    logits_bf = jax.block_until_ready(logits_bf)
    loss_bf = jax.block_until_ready(loss_bf)
    assert jnp.allclose(logits_bf, ref_logits, atol=5e-2, rtol=5e-2)
    assert jnp.allclose(loss_bf, ref_loss, atol=5e-2, rtol=5e-2)

    print("KERNEL_OK")
</pallas_src>

<mosaic_0001>
module attributes {stable_mosaic.version = 11 : i64} {
  func.func @_head_kernel(%arg0: i32, %arg1: memref<8x32xf32, #tpu.memory_space<vmem>>, %arg2: memref<32x128xf32, #tpu.memory_space<vmem>>, %arg3: memref<1x128xf32, #tpu.memory_space<vmem>>, %arg4: memref<8x1xi32, #tpu.memory_space<vmem>>, %arg5: memref<8x128xf32, #tpu.memory_space<vmem>>, %arg6: memref<8x1xf32, #tpu.memory_space<vmem>>) attributes {dimension_semantics = [#tpu.dimension_semantics<parallel>], iteration_bounds = array<i64: 1>, scalar_prefetch = 0 : i64, scratch_operands = 0 : i64, tpu.core_type = #tpu.core_type<tc>, window_params = [{transform_indices = @transform_0, window_bounds = array<i64: 8, 32>}, {pipeline_mode = #tpu.pipeline_mode<synchronous>, transform_indices = @transform_1, window_bounds = array<i64: 32, 128>}, {pipeline_mode = #tpu.pipeline_mode<synchronous>, transform_indices = @transform_2, window_bounds = array<i64: 1, 128>}, {transform_indices = @transform_3, window_bounds = array<i64: 8, 1>}, {transform_indices = @transform_4, window_bounds = array<i64: 8, 128>}, {transform_indices = @transform_5, window_bounds = array<i64: 8, 1>}]} {
    %c0 = arith.constant 0 : index
    %c0_0 = arith.constant 0 : index
    %0 = vector.load %arg1[%c0, %c0_0] : memref<8x32xf32, #tpu.memory_space<vmem>>, vector<8x32xf32>
    %c0_1 = arith.constant 0 : index
    %c0_2 = arith.constant 0 : index
    %1 = vector.load %arg2[%c0_1, %c0_2] : memref<32x128xf32, #tpu.memory_space<vmem>>, vector<32x128xf32>
    %cst = arith.constant dense<0.000000e+00> : vector<8x128xf32>
    %2 = tpu.matmul %0, %1, %cst {dimension_numbers = #tpu.dot_dimension_numbers<[1], [0], [0], [1], [0, 0, 1, 1], [], []>} : vector<8x32xf32>, vector<32x128xf32>, vector<8x128xf32> -> vector<8x128xf32>
    %c0_3 = arith.constant 0 : index
    %c0_4 = arith.constant 0 : index
    %3 = vector.load %arg3[%c0_3, %c0_4] : memref<1x128xf32, #tpu.memory_space<vmem>>, vector<1x128xf32>
    %4 = vector.broadcast %3 : vector<1x128xf32> to vector<8x128xf32>
    %5 = arith.addf %2, %4 : vector<8x128xf32>
    %c0_5 = arith.constant 0 : index
    %c0_6 = arith.constant 0 : index
    %6 = vector.load %arg5[%c0_5, %c0_6] : memref<8x128xf32, #tpu.memory_space<vmem>>, vector<8x128xf32>
    tpu.vector_store %arg5[%c0_5, %c0_6], %5 {strides = array<i32>} : memref<8x128xf32, #tpu.memory_space<vmem>>, vector<8x128xf32>,
    %7 = tpu.iota {dimensions = array<i32: 1>} : vector<8x128xi32>
    %c2_i32 = arith.constant 2 : i32
    %8 = vector.broadcast %c2_i32 : i32 to vector<8x128xi32>
    %9 = arith.cmpi slt, %7, %8 : vector<8x128xi32>
    %cst_7 = arith.constant -1.000000e+30 : f32
    %10 = vector.broadcast %cst_7 : f32 to vector<8x128xf32>
    %11 = arith.select %9, %5, %10 : vector<8x128xi1>, vector<8x128xf32>
    %cst_8 = arith.constant dense<0xFF800000> : vector<8xf32>
    %12 = vector.multi_reduction <maximumf>, %11, %cst_8 [1] : vector<8x128xf32> to vector<8xf32>
    %13 = vector.shape_cast %12 : vector<8xf32> to vector<8x1xf32>
    %14 = vector.broadcast %13 : vector<8x1xf32> to vector<8x128xf32>
    %15 = arith.subf %11, %14 : vector<8x128xf32>
    %16 = math.exp %15 : vector<8x128xf32>
    %cst_9 = arith.constant dense<0.000000e+00> : vector<8xf32>
    %17 = vector.multi_reduction <add>, %16, %cst_9 [1] : vector<8x128xf32> to vector<8xf32>
    %18 = vector.shape_cast %17 : vector<8xf32> to vector<8x1xf32>
    %19 = math.log %18 : vector<8x1xf32>
    %20 = arith.addf %13, %19 : vector<8x1xf32>
    %c0_10 = arith.constant 0 : index
    %c0_11 = arith.constant 0 : index
    %21 = vector.load %arg4[%c0_10, %c0_11] : memref<8x1xi32, #tpu.memory_space<vmem>>, vector<8x1xi32>
    %22 = vector.broadcast %21 : vector<8x1xi32> to vector<8x128xi32>
    %23 = arith.cmpi eq, %7, %22 : vector<8x128xi32>
    %24 = arith.extui %23 : vector<8x128xi1> to vector<8x128xi32>
    %25 = arith.sitofp %24 : vector<8x128xi32> to vector<8x128xf32>
    %26 = arith.mulf %11, %25 : vector<8x128xf32>
    %cst_12 = arith.constant dense<0.000000e+00> : vector<8xf32>
    %27 = vector.multi_reduction <add>, %26, %cst_12 [1] : vector<8x128xf32> to vector<8xf32>
    %28 = vector.shape_cast %27 : vector<8xf32> to vector<8x1xf32>
    %c8_i32 = arith.constant 8 : i32
    %29 = arith.muli %arg0, %c8_i32 : i32
    %30 = tpu.iota {dimensions = array<i32: 0>} : vector<8x1xi32>
    %31 = vector.broadcast %29 : i32 to vector<8x1xi32>
    %32 = arith.addi %31, %30 : vector<8x1xi32>
    %c2_i32_13 = arith.constant 2 : i32
    %33 = vector.broadcast %c2_i32_13 : i32 to vector<8x1xi32>
    %34 = arith.cmpi slt, %32, %33 : vector<8x1xi32>
    %35 = arith.subf %20, %28 : vector<8x1xf32>
    %cst_14 = arith.constant 0.000000e+00 : f32
    %36 = vector.broadcast %cst_14 : f32 to vector<8x1xf32>
    %37 = arith.select %34, %35, %36 : vector<8x1xi1>, vector<8x1xf32>
    %c0_15 = arith.constant 0 : index
    %c0_16 = arith.constant 0 : index
    %38 = vector.load %arg6[%c0_15, %c0_16] : memref<8x1xf32, #tpu.memory_space<vmem>>, vector<8x1xf32>
    tpu.vector_store %arg6[%c0_15, %c0_16], %37 {strides = array<i32>} : memref<8x1xf32, #tpu.memory_space<vmem>>, vector<8x1xf32>,
    return
  }
  func.func @transform_0(%arg0: i32) -> (i32, i32) {
    %c0_i32 = arith.constant 0 : i32
    %c0_i32_0 = arith.constant 0 : i32
    return %arg0, %c0_i32 : i32, i32
  }
  func.func @transform_1(%arg0: i32) -> (i32, i32) {
    %c0_i32 = arith.constant 0 : i32
    %c0_i32_0 = arith.constant 0 : i32
    %c0_i32_1 = arith.constant 0 : i32
    return %c0_i32, %c0_i32_0 : i32, i32
  }
  func.func @transform_2(%arg0: i32) -> (i32, i32) {
    %c0_i32 = arith.constant 0 : i32
    %c0_i32_0 = arith.constant 0 : i32
    %c0_i32_1 = arith.constant 0 : i32
    return %c0_i32, %c0_i32_0 : i32, i32
  }
  func.func @transform_3(%arg0: i32) -> (i32, i32) {
    %c0_i32 = arith.constant 0 : i32
    %c0_i32_0 = arith.constant 0 : i32
    return %arg0, %c0_i32 : i32, i32
  }
  func.func @transform_4(%arg0: i32) -> (i32, i32) {
    %c0_i32 = arith.constant 0 : i32
    %c0_i32_0 = arith.constant 0 : i32
    return %arg0, %c0_i32 : i32, i32
  }
  func.func @transform_5(%arg0: i32) -> (i32, i32) {
    %c0_i32 = arith.constant 0 : i32
    %c0_i32_0 = arith.constant 0 : i32
    return %arg0, %c0_i32 : i32, i32
  }
}

</mosaic_0001>

<llo_original>
// kernel: tpu_custom_call.1
$region0: #{tpu_custom_call.1}
  #allocation0 [shape = 'u32[]', space=smem, size = 0x4, offset = 0x4, fixed_abs, tag = 'smem constant byte address 0x4 - core index']
  #allocation1 [shape = 'u32[144,128]{1,0:T(1,128)}', space=vmem, size = 0x12000, scoped, tag = 'internal scratch']
  %s0 = inlined_call_operand.vmem [shape: f32[2,32], index: 0, kind: input, shape index: {}]
  %s1 = inlined_call_operand.hbm [shape: f32[32,128], index: 1, kind: input, shape index: {}]
  %s2 = inlined_call_operand.vmem [shape: f32[1,128], index: 2, kind: input, shape index: {}]
  %s3 = inlined_call_operand.vmem [shape: s32[2,1], index: 3, kind: input, shape index: {}]
  %s4 = inlined_call_operand.hbm [shape: f32[2,128], index: 4, kind: output, shape index: {0}]
  %s5 = inlined_call_operand.vmem [shape: f32[2,1], index: 5, kind: output, shape index: {1}]
  %6 = xla_tuple %s4, %s5
  %s7 = sld [smem:[#allocation0]]
  $region68: #{tpu_custom_call.1} parent=0
    _
  %s9 = ssub.s32 1, %s7
  %s10 = scalar_select 0, %s9, %s7
  $region1: #{tpu_custom_call.1} parent=0
    #allocation2 [shape = 'u8[16384]{0}', space=vmem, size = 0x4000, scoped, tag = 'input window, operand 1, single buffered']
    #allocation3 [shape = 's32[1]{0}', space=sflag, size = 0x4, scoped, tag = 'scoped memory for tpu_custom_call.1']
    #allocation4 [shape = 's32[1]{0}', space=sflag, size = 0x4, scoped, tag = 'scoped memory for tpu_custom_call.1']
    #allocation5 [shape = 'u8[4096]{0}', space=vmem, size = 0x1000, scoped, tag = 'output window, operand 0, single buffered']
    #allocation6 [shape = 'u8[4096]{0}', space=vmem, size = 0x1000, scoped, tag = 'output window, operand 1, single buffered']
    %11 = vsyncpa [#allocation3], 0
    %12 = vsyncpa [#allocation4], 0
    // Predicated region
    $region2: #{tpu_custom_call.1} parent=1 // pred_check
      _
    $region3: #{tpu_custom_call.1} parent=1 // pred_check_branch
      %14 = sbr.rel (0) target = $region5
    $region4: #{tpu_custom_call.1} parent=1 // pred_region
      _
    $region5: #{tpu_custom_call.1} parent=1 // pred_fallthru
      _
    // Predicated region
    $region6: #{tpu_custom_call.1} parent=1 // pred_check
      _
    $region7: #{tpu_custom_call.1} parent=1 // pred_check_branch
      %16 = sbr.rel (0) target = $region9
    $region8: #{tpu_custom_call.1} parent=1 // pred_region
      %s18 = ssub.s32 512, 512
      %19 = vsyncadd [#allocation3], %s18
      %s20 = sshll.u32 [#allocation2], 4
      %s21 = int_to_ptr.vmem [resolvable:$true] %s20
      %26 = dma.hbm_to_vmem [thread:$0]  %s1, 512, %s21, [#allocation3], 128, 128, 8
    $region9: #{tpu_custom_call.1} parent=1 // pred_fallthru
      _
    // Predicated region
    $region10: #{tpu_custom_call.1} parent=1 // pred_check
      _
    $region11: #{tpu_custom_call.1} parent=1 // pred_check_branch
      %28 = sbr.rel (0) target = $region13
    $region12: #{tpu_custom_call.1} parent=1 // pred_region
      _
    $region13: #{tpu_custom_call.1} parent=1 // pred_fallthru
      _
    // Predicated region
    $region14: #{tpu_custom_call.1} parent=1 // pred_check
      _
    $region15: #{tpu_custom_call.1} parent=1 // pred_check_branch
      %30 = sbr.rel (0) target = $region17
    $region16: #{tpu_custom_call.1} parent=1 // pred_region
      _
    $region17: #{tpu_custom_call.1} parent=1 // pred_fallthru
      _
    // Predicated region
    $region18: #{tpu_custom_call.1} parent=1 // pred_check
      _
    $region19: #{tpu_custom_call.1} parent=1 // pred_check_branch
      %32 = sbr.rel (0) target = $region21
    $region20: #{tpu_custom_call.1} parent=1 // pred_region
      %33 = dma.done [#allocation3], 512
    $region21: #{tpu_custom_call.1} parent=1 // pred_fallthru
      _
    %v34 = vld [vmem:[%s0] sm:$0xff]
    %v35 = vld [vmem:[#allocation2] sm:$0xff]
    %v36 = vld [vmem:[#allocation2 + $0x8] sm:$0xff]
    %v37 = vld [vmem:[#allocation2 + $0x10] sm:$0xff]
    %v38 = vld [vmem:[#allocation2 + $0x18] sm:$0xff]
    %v39 = vld [vmem:[%s2] sm:$0x1]
    %v41 = vlaneseq
    %v42 = vshrl.u32 %v41, 7
    %v43 = vsub.s32 0, %v42
    %v44 = vrot.slane %v39, %v43
    %vm46 = vcmask 261120
    %v48 = vsel %vm46, %v34, 0
    %50 = vmatprep.subr.mxu0 0.0
    %51 = vmatpush1.msra.mxu0 %v35
    %52 = vmatprep.subr.mxu0 0.0
    %53 = vmatpush1.msra.mxu0 %v36
    %54 = vmatprep.subr.mxu0 0.0
    %55 = vmatpush1.msra.mxu0 %v37
    %56 = vmatprep.subr.mxu0 0.0
    %57 = vmatpush1.msra.mxu0 %v38
    %58 = vmatprep.subr.mxu0 0.0
    %59 = vmatpush1.msra.mxu0 0.0
    %60 = vmatprep.subr.mxu0 0.0
    %61 = vmatpush1.msra.mxu0 0.0
    %62 = vmatprep.subr.mxu0 0.0
    %63 = vmatpush1.msra.mxu0 0.0
    %64 = vmatprep.subr.mxu0 0.0
    %65 = vmatpush1.msra.mxu0 0.0
    %66 = vmatprep.subr.mxu0 0.0
    %67 = vmatpush1.msra.mxu0 0.0
    %68 = vmatprep.subr.mxu0 0.0
    %69 = vmatpush1.msra.mxu0 0.0
    %70 = vmatprep.subr.mxu0 0.0
    %71 = vmatpush1.msra.mxu0 0.0
    %72 = vmatprep.subr.mxu0 0.0
    %73 = vmatpush1.msra.mxu0 0.0
    %74 = vmatprep.subr.mxu0 0.0
    %75 = vmatpush1.msra.mxu0 0.0
    %76 = vmatprep.subr.mxu0 0.0
    %77 = vmatpush1.msra.mxu0 0.0
    %78 = vmatprep.subr.mxu0 0.0
    %79 = vmatpush1.msra.mxu0 0.0
    %80 = vmatprep.subr.mxu0 0.0
    %81 = vmatpush1.msra.mxu0 0.0
    %82 = vmatprep.subr.mxu0 0.0
    %83 = vmatpush1.msra.mxu0 0.0
    %84 = vmatprep.subr.mxu0 0.0
    %85 = vmatpush1.msra.mxu0 0.0
    %86 = vmatprep.subr.mxu0 0.0
    %87 = vmatpush1.msra.mxu0 0.0
    %88 = vmatprep.subr.mxu0 0.0
    %89 = vmatpush1.msra.mxu0 0.0
    %90 = vmatprep.subr.mxu0 0.0
    %91 = vmatpush1.msra.mxu0 0.0
    %92 = vmatprep.subr.mxu0 0.0
    %93 = vmatpush1.msra.mxu0 0.0
    %94 = vmatprep.subr.mxu0 0.0
    %95 = vmatpush1.msra.mxu0 0.0
    %96 = vmatprep.subr.mxu0 0.0
    %97 = vmatpush1.msra.mxu0 0.0
    %98 = vmatprep.subr.mxu0 0.0
    %99 = vmatpush1.msra.mxu0 0.0
    %100 = vmatprep.subr.mxu0 0.0
    %101 = vmatpush1.msra.mxu0 0.0
    %102 = vmatprep.subr.mxu0 0.0
    %103 = vmatpush1.msra.mxu0 0.0
    %104 = vmatprep.subr.mxu0 0.0
    %105 = vmatpush1.msra.mxu0 0.0
    %106 = vmatprep.subr.mxu0 0.0
    %107 = vmatpush1.msra.mxu0 0.0
    %108 = vmatprep.subr.mxu0 0.0
    %109 = vmatpush1.msra.mxu0 0.0
    %110 = vmatprep.subr.mxu0 0.0
    %111 = vmatpush1.msra.mxu0 0.0
    %112 = vmatprep.subr.mxu0 0.0
    %113 = vmatpush1.msra.mxu0 0.0
    %114 = vmatprep.mubr.f32.mxu0 0.0
    %115 = vmatmul.mubr.f32.gmra.mrb[0].mxu0 %v48
    %v116 = vpop.f32.mrb[0].mxu0
    %v117 = vadd.f32 %v44, %v116
    %v118 = vpop.f32.mrb[0].mxu0
    %119 = vdwg.mxu0
    %120 = vst [vmem:[#allocation5] sm:$0xff] %v117
    %v121 = vlaneseq
    %v122 = vand.u32 %v121, 127
    %vm123 = vcmp.lt.s32.totalorder %v122, 2
    %v124 = vsel %vm123, %v117, -1e+30
    %125 = vmax.xlane.f32.xlu0 %v124
    %v126 = vpop.xlane.xlu0 %125
    %v127 = vsub.f32 %v124, %v126
    %v128 = vmul.f32 %v127, 1.442695
    %v129 = vpow.pop %v128
    %130 = vadd.xlane.f32.xlu0 %v129
    %v131 = vpop.xlane.xlu0 %130
    %v132 = vlog2.pop %v131
    %v133 = vmul.f32 %v132, 0.6931472
    %v134 = vadd.f32 %v126, %v133
    %v135 = vld [vmem:[%s3] sm:$0xff]
    %136 = vset.pattern.permute.xlu0 0
    %137 = vperm.xlu0 %136, %v135
    %v138 = vpop.permute.xlu0 %137
    %vm139 = vcmp.eq.s32.totalorder %v122, %v138
    %v140 = vsel %vm139, 1, 0
    %v141 = vcvt.s32.f32 %v140
    %v142 = vmul.f32 %v124, %v141
    %143 = vadd.xlane.f32.xlu0 %v142
    %v144 = vpop.xlane.xlu0 %143
    %s145 = smul.u32 0, 8
    %v146 = vlaneseq
    %v147 = vshrl.u32 %v146, 7
    %v148 = vstv %s145
    %v149 = vadd.s32 %v148, %v147
    %vm150 = vcmp.lt.s32.totalorder %v149, 2
    %v151 = vsub.f32 %v134, %v144
    %v152 = vsel %vm150, %v151, 0.0
    %vm153 = vcmask 7168
    %154 = vst.msk [vmem:[#allocation6] sm:$0xff] %vm153, %v152
    // Predicated region
    $region22: #{tpu_custom_call.1} parent=1 // pred_check
      _
    $region23: #{tpu_custom_call.1} parent=1 // pred_check_branch
      %156 = sbr.rel (0) target = $region25
    $region24: #{tpu_custom_call.1} parent=1 // pred_region
      %s158 = ssub.s32 128, 32
      %159 = vsyncadd [#allocation4], %s158
      %s160 = sshll.u32 [#allocation5], 4
      %s161 = int_to_ptr.vmem [resolvable:$true] %s160
      %166 = dma.vmem_to_hbm [thread:$0]  %s161, 32, %s4, [#allocation4], 32, 32, 2
    $region25: #{tpu_custom_call.1} parent=1 // pred_fallthru
      _
    // Predicated region
    $region26: #{tpu_custom_call.1} parent=1 // pred_check
      _
    $region27: #{tpu_custom_call.1} parent=1 // pred_check_branch
      %168 = sbr.rel (0) target = $region29
    $region28: #{tpu_custom_call.1} parent=1 // pred_region
      // Predicated region
      $region30: #{tpu_custom_call.1} parent=28 // pred_check
        _
      $region31: #{tpu_custom_call.1} parent=28 // pred_check_branch
        %170 = sbr.rel (0) target = $region33
      $region32: #{tpu_custom_call.1} parent=28 // pred_region
        // Predicated region
        $region34: #{tpu_custom_call.1} parent=32 // pred_check
          _
        $region35: #{tpu_custom_call.1} parent=32 // pred_check_branch
          %172 = sbr.rel target = $region37
        $region36: #{tpu_custom_call.1} parent=32 // pred_region
          // Predicated region
          $region49: #{tpu_custom_call.1} parent=36 // pred_check
            _
          $region50: #{tpu_custom_call.1} parent=36 // pred_check_branch
            %187 = sbr.rel (0) target = $region52
          $region51: #{tpu_custom_call.1} parent=36 // pred_region
            loop: start=0, step=1, limit=1
            $region53: #{tpu_custom_call.1} parent=51 // loop_pre_header
              _
            $region54: #{tpu_custom_call.1} parent=51 // loop_header
              %s190 = sphi 0, %s194
              %p191 = scmp.ge.s32.totalorder %s190, 1
              %s195 = sphi [#allocation6], [#allocation6]
              %s196 = sphi %s5, %s5
            $region55: #{tpu_custom_call.1} parent=51 // loop_header_branch
              %193 = sbr.rel (%p191) target = $region59
            $region56: #{tpu_custom_call.1} parent=51 // loop_body
              %v197 = vld [vmem:[%s195] sm:$0x3]
              %198 = vst [vmem:[%s196] sm:$0x3] %v197
            $region57: #{tpu_custom_call.1} parent=51 // loop_footer
              %s194 = sadd.s32 1, %s190
            $region58: #{tpu_custom_call.1} parent=51 // loop_footer_branch
              %189 = sbr.rel target = $region54
            $region59: #{tpu_custom_call.1} parent=51 // loop_exit
              _
          $region52: #{tpu_custom_call.1} parent=36 // pred_fallthru
            _
        $region37: #{tpu_custom_call.1} parent=32 // pred_fallthru
          _
        // Predicated region
        $region38: #{tpu_custom_call.1} parent=32 // pred_check
          _
        $region39: #{tpu_custom_call.1} parent=32 // pred_check_branch
          %174 = sbr.rel (0) target = $region41
        $region40: #{tpu_custom_call.1} parent=32 // pred_region
          loop: start=0, step=1, limit=1
          $region42: #{tpu_custom_call.1} parent=40 // loop_pre_header
            _
          $region43: #{tpu_custom_call.1} parent=40 // loop_header
            %s177 = sphi 0, %s181
            %p178 = scmp.ge.s32.totalorder %s177, 1
            %s182 = sphi [#allocation6], [#allocation6]
            %s183 = sphi %s5, %s5
          $region44: #{tpu_custom_call.1} parent=40 // loop_header_branch
            %180 = sbr.rel (%p178) target = $region48
          $region45: #{tpu_custom_call.1} parent=40 // loop_body
            %v184 = vld [vmem:[%s182] sm:$0x3]
            %185 = vst [vmem:[%s183] sm:$0x3] %v184
          $region46: #{tpu_custom_call.1} parent=40 // loop_footer
            %s181 = sadd.s32 1, %s177
          $region47: #{tpu_custom_call.1} parent=40 // loop_footer_branch
            %176 = sbr.rel target = $region43
          $region48: #{tpu_custom_call.1} parent=40 // loop_exit
            _
        $region41: #{tpu_custom_call.1} parent=32 // pred_fallthru
          _
      $region33: #{tpu_custom_call.1} parent=28 // pred_fallthru
        _
      %199 = vnop
    $region29: #{tpu_custom_call.1} parent=1 // pred_fallthru
      _
    // Predicated region
    $region60: #{tpu_custom_call.1} parent=1 // pred_check
      _
    $region61: #{tpu_custom_call.1} parent=1 // pred_check_branch
      %201 = sbr.rel (0) target = $region63
    $region62: #{tpu_custom_call.1} parent=1 // pred_region
      %202 = dma.done [#allocation4], 128
    $region63: #{tpu_custom_call.1} parent=1 // pred_fallthru
      _
    // Predicated region
    $region64: #{tpu_custom_call.1} parent=1 // pred_check
      _
    $region65: #{tpu_custom_call.1} parent=1 // pred_check_branch
      %204 = sbr.rel (0) target = $region67
    $region66: #{tpu_custom_call.1} parent=1 // pred_region
      _
    $region67: #{tpu_custom_call.1} parent=1 // pred_fallthru
      _
    %205 = vsyncpa [#allocation3], 1
    %206 = vsyncpa [#allocation4], 1

</llo_original>
